<compile_context>
chip_gen: v5e
topology: v5e:2x2
jax: 0.10.0
libtpu: 0.0.40
codegen_flags: <defaults>
</compile_context>

<pallas_src>
import numpy as np
import jax
import jax.numpy as jnp
from jax.experimental import pallas as pl
from jax.experimental.pallas import tpu as pltpu


def _neg_pearson_kernel(x_ref, y_ref, out_ref, sxy_ref, sxx_ref, syy_ref):
    i = pl.program_id(0)

    # Zero the three global accumulators on the first grid step.
    @pl.when(i == 0)
    def _():
        sxy_ref[...] = jnp.zeros_like(sxy_ref)
        sxx_ref[...] = jnp.zeros_like(sxx_ref)
        syy_ref[...] = jnp.zeros_like(syy_ref)

    x = x_ref[...]                                      # (row_tile, T) f32
    y = y_ref[...]

    # Per-row mean subtraction (dim=1, keepdim=True).  T is never tiled, so
    # each row's mean is exact within this grid step.
    vx = x - jnp.mean(x, axis=1, keepdims=True)
    vy = y - jnp.mean(y, axis=1, keepdims=True)

    # Accumulate the three global sums as (1,1) tensors (stay in vregs).
    sxy_ref[...] += jnp.sum(vx * vy, keepdims=True)
    sxx_ref[...] += jnp.sum(vx * vx, keepdims=True)
    syy_ref[...] += jnp.sum(vy * vy, keepdims=True)

    # Finalize on the last grid step: cost = 1 - sxy / sqrt(sxx * syy).
    @pl.when(i == pl.num_programs(0) - 1)
    def _():
        r = sxy_ref[...] * jax.lax.rsqrt(sxx_ref[...] * syy_ref[...])
        out_ref[...] = 1.0 - r


def _default_row_tile(N, T, vmem_budget_bytes=8 * 1024 * 1024):
    """Largest sublane-aligned divisor of N whose double-buffered input tiles
    (2 inputs x 2 buffers x row_tile x T x 4B) fit in the VMEM budget."""
    if N <= 8:
        return N
    max_rows = max(8, vmem_budget_bytes // (4 * 2 * 2 * T))
    if N <= max_rows:
        return N
    # Largest multiple of 8 that divides N and is <= max_rows.
    best = None
    for rt in range(8, min(N, max_rows) + 1, 8):
        if N % rt == 0:
            best = rt
    return best if best is not None else N  # fall back to a single full tile


def make_neg_pearson_loss(N, T, row_tile=None):
    """Builds the loss function for a fixed (N, T) input shape.

    N: number of rows (dim 0), T: signal length (dim 1, lane axis).
    row_tile: rows processed per grid step (default: auto, VMEM-friendly).
    """
    if row_tile is None:
        row_tile = _default_row_tile(N, T)
    if row_tile >= N:
        row_tile = N
    assert N % row_tile == 0, "N must be divisible by row_tile"
    if row_tile != N:
        assert row_tile % 8 == 0, "partial row tiles must be sublane-aligned (8)"
    grid = (N // row_tile,)

    call = pl.pallas_call(
        _neg_pearson_kernel,
        out_shape=jax.ShapeDtypeStruct((1, 1), jnp.float32),
        grid_spec=pltpu.PrefetchScalarGridSpec(
            num_scalar_prefetch=0,
            grid=grid,
            in_specs=[
                pl.BlockSpec((row_tile, T), lambda i: (i, 0)),
                pl.BlockSpec((row_tile, T), lambda i: (i, 0)),
            ],
            out_specs=pl.BlockSpec((1, 1), lambda i: (0, 0)),
            scratch_shapes=[
                pltpu.VMEM((1, 1), jnp.float32),
                pltpu.VMEM((1, 1), jnp.float32),
                pltpu.VMEM((1, 1), jnp.float32),
            ],
        ),
        compiler_params=pltpu.CompilerParams(
            # Single grid axis is a global reduction -> must be "arbitrary".
            dimension_semantics=("arbitrary",),
        ),
    )

    @jax.jit
    def loss_fn(x, y):
        return call(x.astype(jnp.float32), y.astype(jnp.float32))[0, 0]

    return loss_fn


def _ref_loss(x, y):
    """Pure-numpy reference mirroring the PyTorch module (float64)."""
    vx = x - x.mean(axis=1, keepdims=True)
    vy = y - y.mean(axis=1, keepdims=True)
    r = (vx * vy).sum() / (np.sqrt((vx * vx).sum()) * np.sqrt((vy * vy).sum()))
    return float(1.0 - r)


if __name__ == "__main__":
    # Small (batch, time) shape consistent with the module's dim=1 usage.
    N, T = 16, 128

    key = jax.random.PRNGKey(0)
    kx, ky = jax.random.split(key)
    x = jax.random.normal(kx, (N, T), jnp.float32)
    # Correlate y with x so the Pearson r is non-trivial.
    y = 0.5 * x + 0.5 * jax.random.normal(ky, (N, T), jnp.float32)

    # row_tile=8 exercises the gridded accumulation path (grid = (2,)).
    loss_fn = make_neg_pearson_loss(N, T, row_tile=8)
    out = loss_fn(x, y)
    jax.block_until_ready(out)

    ref = _ref_loss(np.asarray(x, np.float64), np.asarray(y, np.float64))
    np.testing.assert_allclose(float(out), ref, rtol=1e-4, atol=1e-6)

    # Also check the single-tile (default row_tile) path.
    loss_fn_full = make_neg_pearson_loss(N, T)
    out_full = loss_fn_full(x, y)
    jax.block_until_ready(out_full)
    np.testing.assert_allclose(float(out_full), ref, rtol=1e-4, atol=1e-6)

    print("KERNEL_OK")
</pallas_src>

<mosaic_0001>
module attributes {stable_mosaic.version = 11 : i64} {
  func.func @_neg_pearson_kernel(%arg0: i32, %arg1: memref<8x128xf32, #tpu.memory_space<vmem>>, %arg2: memref<8x128xf32, #tpu.memory_space<vmem>>, %arg3: memref<1x1xf32, #tpu.memory_space<vmem>>, %arg4: memref<1x1xf32, #tpu.memory_space<vmem>>, %arg5: memref<1x1xf32, #tpu.memory_space<vmem>>, %arg6: memref<1x1xf32, #tpu.memory_space<vmem>>) attributes {dimension_semantics = [#tpu.dimension_semantics<arbitrary>], iteration_bounds = array<i64: 2>, scalar_prefetch = 0 : i64, scratch_operands = 3 : i64, tpu.core_type = #tpu.core_type<tc>, window_params = [{transform_indices = @transform_0, window_bounds = array<i64: 8, 128>}, {transform_indices = @transform_1, window_bounds = array<i64: 8, 128>}, {pipeline_mode = #tpu.pipeline_mode<synchronous>, transform_indices = @transform_2, window_bounds = array<i64: 1, 1>}]} {
    %c0_i32 = arith.constant 0 : i32
    %0 = arith.cmpi eq, %arg0, %c0_i32 : i32
    %1 = arith.extui %0 : i1 to i32
    %c0_i32_0 = arith.constant 0 : i32
    %2 = arith.cmpi ne, %1, %c0_i32_0 : i32
    scf.if %2 {
      %cst_23 = arith.constant 0.000000e+00 : f32
      %47 = vector.broadcast %cst_23 : f32 to vector<1x1xf32>
      %c0_24 = arith.constant 0 : index
      %c0_25 = arith.constant 0 : index
      %48 = vector.load %arg4[%c0_24, %c0_25] : memref<1x1xf32, #tpu.memory_space<vmem>>, vector<1x1xf32>
      tpu.vector_store %arg4[%c0_24, %c0_25], %47 {strides = array<i32>} : memref<1x1xf32, #tpu.memory_space<vmem>>, vector<1x1xf32>,
      %cst_26 = arith.constant 0.000000e+00 : f32
      %49 = vector.broadcast %cst_26 : f32 to vector<1x1xf32>
      %c0_27 = arith.constant 0 : index
      %c0_28 = arith.constant 0 : index
      %50 = vector.load %arg5[%c0_27, %c0_28] : memref<1x1xf32, #tpu.memory_space<vmem>>, vector<1x1xf32>
      tpu.vector_store %arg5[%c0_27, %c0_28], %49 {strides = array<i32>} : memref<1x1xf32, #tpu.memory_space<vmem>>, vector<1x1xf32>,
      %cst_29 = arith.constant 0.000000e+00 : f32
      %51 = vector.broadcast %cst_29 : f32 to vector<1x1xf32>
      %c0_30 = arith.constant 0 : index
      %c0_31 = arith.constant 0 : index
      %52 = vector.load %arg6[%c0_30, %c0_31] : memref<1x1xf32, #tpu.memory_space<vmem>>, vector<1x1xf32>
      tpu.vector_store %arg6[%c0_30, %c0_31], %51 {strides = array<i32>} : memref<1x1xf32, #tpu.memory_space<vmem>>, vector<1x1xf32>,
    } else {
    }
    %c0 = arith.constant 0 : index
    %c0_1 = arith.constant 0 : index
    %3 = vector.load %arg1[%c0, %c0_1] : memref<8x128xf32, #tpu.memory_space<vmem>>, vector<8x128xf32>
    %c0_2 = arith.constant 0 : index
    %c0_3 = arith.constant 0 : index
    %4 = vector.load %arg2[%c0_2, %c0_3] : memref<8x128xf32, #tpu.memory_space<vmem>>, vector<8x128xf32>
    %cst = arith.constant dense<0.000000e+00> : vector<8xf32>
    %5 = vector.multi_reduction <add>, %3, %cst [1] : vector<8x128xf32> to vector<8xf32>
    %6 = vector.shape_cast %5 : vector<8xf32> to vector<8x1xf32>
    %cst_4 = arith.constant 1.280000e+02 : f32
    %7 = vector.broadcast %cst_4 : f32 to vector<8x1xf32>
    %8 = arith.divf %6, %7 : vector<8x1xf32>
    %9 = vector.broadcast %8 : vector<8x1xf32> to vector<8x128xf32>
    %10 = arith.subf %3, %9 : vector<8x128xf32>
    %cst_5 = arith.constant dense<0.000000e+00> : vector<8xf32>
    %11 = vector.multi_reduction <add>, %4, %cst_5 [1] : vector<8x128xf32> to vector<8xf32>
    %12 = vector.shape_cast %11 : vector<8xf32> to vector<8x1xf32>
    %cst_6 = arith.constant 1.280000e+02 : f32
    %13 = vector.broadcast %cst_6 : f32 to vector<8x1xf32>
    %14 = arith.divf %12, %13 : vector<8x1xf32>
    %15 = vector.broadcast %14 : vector<8x1xf32> to vector<8x128xf32>
    %16 = arith.subf %4, %15 : vector<8x128xf32>
    %c0_7 = arith.constant 0 : index
    %c0_8 = arith.constant 0 : index
    %17 = vector.load %arg4[%c0_7, %c0_8] : memref<1x1xf32, #tpu.memory_space<vmem>>, vector<1x1xf32>
    %18 = arith.mulf %10, %16 : vector<8x128xf32>
    %19 = vector.shape_cast %18 : vector<8x128xf32> to vector<1x8x128xf32>
    %cst_9 = arith.constant dense<0.000000e+00> : vector<1xf32>
    %20 = vector.multi_reduction <add>, %19, %cst_9 [1, 2] : vector<1x8x128xf32> to vector<1xf32>
    %21 = vector.shape_cast %20 : vector<1xf32> to vector<1x1x1xf32>
    %22 = vector.extract %21[0, 0, 0] : f32 from vector<1x1x1xf32>
    %23 = vector.broadcast %22 : f32 to vector<1x1xf32>
    %24 = arith.addf %17, %23 : vector<1x1xf32>
    %c0_10 = arith.constant 0 : index
    %c0_11 = arith.constant 0 : index
    %25 = vector.load %arg4[%c0_10, %c0_11] : memref<1x1xf32, #tpu.memory_space<vmem>>, vector<1x1xf32>
    tpu.vector_store %arg4[%c0_10, %c0_11], %24 {strides = array<i32>} : memref<1x1xf32, #tpu.memory_space<vmem>>, vector<1x1xf32>,
    %c0_12 = arith.constant 0 : index
    %c0_13 = arith.constant 0 : index
    %26 = vector.load %arg5[%c0_12, %c0_13] : memref<1x1xf32, #tpu.memory_space<vmem>>, vector<1x1xf32>
    %27 = arith.mulf %10, %10 : vector<8x128xf32>
    %28 = vector.shape_cast %27 : vector<8x128xf32> to vector<1x8x128xf32>
    %cst_14 = arith.constant dense<0.000000e+00> : vector<1xf32>
    %29 = vector.multi_reduction <add>, %28, %cst_14 [1, 2] : vector<1x8x128xf32> to vector<1xf32>
    %30 = vector.shape_cast %29 : vector<1xf32> to vector<1x1x1xf32>
    %31 = vector.extract %30[0, 0, 0] : f32 from vector<1x1x1xf32>
    %32 = vector.broadcast %31 : f32 to vector<1x1xf32>
    %33 = arith.addf %26, %32 : vector<1x1xf32>
    %c0_15 = arith.constant 0 : index
    %c0_16 = arith.constant 0 : index
    %34 = vector.load %arg5[%c0_15, %c0_16] : memref<1x1xf32, #tpu.memory_space<vmem>>, vector<1x1xf32>
    tpu.vector_store %arg5[%c0_15, %c0_16], %33 {strides = array<i32>} : memref<1x1xf32, #tpu.memory_space<vmem>>, vector<1x1xf32>,
    %c0_17 = arith.constant 0 : index
    %c0_18 = arith.constant 0 : index
    %35 = vector.load %arg6[%c0_17, %c0_18] : memref<1x1xf32, #tpu.memory_space<vmem>>, vector<1x1xf32>
    %36 = arith.mulf %16, %16 : vector<8x128xf32>
    %37 = vector.shape_cast %36 : vector<8x128xf32> to vector<1x8x128xf32>
    %cst_19 = arith.constant dense<0.000000e+00> : vector<1xf32>
    %38 = vector.multi_reduction <add>, %37, %cst_19 [1, 2] : vector<1x8x128xf32> to vector<1xf32>
    %39 = vector.shape_cast %38 : vector<1xf32> to vector<1x1x1xf32>
    %40 = vector.extract %39[0, 0, 0] : f32 from vector<1x1x1xf32>
    %41 = vector.broadcast %40 : f32 to vector<1x1xf32>
    %42 = arith.addf %35, %41 : vector<1x1xf32>
    %c0_20 = arith.constant 0 : index
    %c0_21 = arith.constant 0 : index
    %43 = vector.load %arg6[%c0_20, %c0_21] : memref<1x1xf32, #tpu.memory_space<vmem>>, vector<1x1xf32>
    tpu.vector_store %arg6[%c0_20, %c0_21], %42 {strides = array<i32>} : memref<1x1xf32, #tpu.memory_space<vmem>>, vector<1x1xf32>,
    %c1_i32 = arith.constant 1 : i32
    %44 = arith.cmpi eq, %arg0, %c1_i32 : i32
    %45 = arith.extui %44 : i1 to i32
    %c0_i32_22 = arith.constant 0 : i32
    %46 = arith.cmpi ne, %45, %c0_i32_22 : i32
    scf.if %46 {
      %c0_23 = arith.constant 0 : index
      %c0_24 = arith.constant 0 : index
      %47 = vector.load %arg4[%c0_23, %c0_24] : memref<1x1xf32, #tpu.memory_space<vmem>>, vector<1x1xf32>
      %c0_25 = arith.constant 0 : index
      %c0_26 = arith.constant 0 : index
      %48 = vector.load %arg5[%c0_25, %c0_26] : memref<1x1xf32, #tpu.memory_space<vmem>>, vector<1x1xf32>
      %c0_27 = arith.constant 0 : index
      %c0_28 = arith.constant 0 : index
      %49 = vector.load %arg6[%c0_27, %c0_28] : memref<1x1xf32, #tpu.memory_space<vmem>>, vector<1x1xf32>
      %50 = arith.mulf %48, %49 : vector<1x1xf32>
      %51 = math.rsqrt %50 : vector<1x1xf32>
      %52 = arith.mulf %47, %51 : vector<1x1xf32>
      %cst_29 = arith.constant 1.000000e+00 : f32
      %53 = vector.broadcast %cst_29 : f32 to vector<1x1xf32>
      %54 = arith.subf %53, %52 : vector<1x1xf32>
      %c0_30 = arith.constant 0 : index
      %c0_31 = arith.constant 0 : index
      %55 = vector.load %arg3[%c0_30, %c0_31] : memref<1x1xf32, #tpu.memory_space<vmem>>, vector<1x1xf32>
      tpu.vector_store %arg3[%c0_30, %c0_31], %54 {strides = array<i32>} : memref<1x1xf32, #tpu.memory_space<vmem>>, vector<1x1xf32>,
    } else {
    }
    return
  }
  func.func @transform_0(%arg0: i32) -> (i32, i32) {
    %c0_i32 = arith.constant 0 : i32
    %c0_i32_0 = arith.constant 0 : i32
    return %arg0, %c0_i32 : i32, i32
  }
  func.func @transform_1(%arg0: i32) -> (i32, i32) {
    %c0_i32 = arith.constant 0 : i32
    %c0_i32_0 = arith.constant 0 : i32
    return %arg0, %c0_i32 : i32, i32
  }
  func.func @transform_2(%arg0: i32) -> (i32, i32) {
    %c0_i32 = arith.constant 0 : i32
    %c0_i32_0 = arith.constant 0 : i32
    %c0_i32_1 = arith.constant 0 : i32
    return %c0_i32, %c0_i32_0 : i32, i32
  }
}

</mosaic_0001>

<llo_original>
// kernel: loss_fn.1
$region0: #{loss_fn.1}
  #allocation0 [shape = 'u32[]', space=smem, size = 0x4, offset = 0x4, fixed_abs, tag = 'smem constant byte address 0x4 - core index']
  #allocation1 [shape = 'u32[72,128]{1,0:T(1,128)}', space=vmem, size = 0x9000, scoped, tag = 'internal scratch']
  #allocation2 [shape = 'f32[1,1]{1,0:T(1,128)}', space=vmem, size = 0x200, scoped, tag = 'scratch operand']
  #allocation3 [shape = 'f32[1,1]{1,0:T(1,128)}', space=vmem, size = 0x200, scoped, tag = 'scratch operand']
  #allocation4 [shape = 'f32[1,1]{1,0:T(1,128)}', space=vmem, size = 0x200, scoped, tag = 'scratch operand']
  %s0 = inlined_call_operand.hbm [shape: f32[16,128], index: 0, kind: input, shape index: {}]
  %s1 = inlined_call_operand.hbm [shape: f32[16,128], index: 1, kind: input, shape index: {}]
  %s2 = inlined_call_operand.hbm [shape: f32[1,1], index: 2, kind: output, shape index: {}]
  %s3 = sld [smem:[#allocation0]]
  $region57: #{loss_fn.1} parent=0
    _
  %s5 = ssub.s32 1, %s3
  %s6 = scalar_select 0, %s5, %s3
  $region1: #{loss_fn.1} parent=0
    #allocation5 [shape = 'u8[8192]{0}', space=vmem, size = 0x2000, scoped, tag = 'input window, operand 0']
    #allocation6 [shape = 's32[2]{0}', space=sflag, size = 0x8, scoped, tag = 'scoped memory for loss_fn.1']
    #allocation7 [shape = 's32[2]{0}', space=sflag, size = 0x8, scoped, tag = 'scoped memory for loss_fn.1']
    #allocation8 [shape = 'u8[8192]{0}', space=vmem, size = 0x2000, scoped, tag = 'input window, operand 1']
    #allocation9 [shape = 's32[2]{0}', space=sflag, size = 0x8, scoped, tag = 'scoped memory for loss_fn.1']
    #allocation10 [shape = 'u8[512]{0}', space=vmem, size = 0x400, scoped, tag = 'output window, operand 0, single buffered']
    %7 = vsyncpa [#allocation6], 0
    %s8 = scalar_lea.sflag [#allocation6], 1
    %9 = vsyncpa %s8, 0
    %10 = vsyncpa [#allocation9], 0
    %s11 = scalar_lea.sflag [#allocation9], 1
    %12 = vsyncpa %s11, 0
    %13 = vsyncpa [#allocation7], 0
    loop: start=0, step=1, limit=4
    $region2: #{loss_fn.1} parent=1 // loop_pre_header
      _
    $region3: #{loss_fn.1} parent=1 // loop_header
      %s15 = sphi 0, %s19
      %p16 = scmp.ge.s32.totalorder %s15, 4
      %s25 = sphi 0, %s27
      %s28 = sphi 0, %s25
      %s29 = sphi 0, %s28
      %s45 = sphi 0, %s29
      %s51 = sphi 0, %s53
      %s54 = sphi 0, %s51
      %s55 = sphi 0, %s54
      %s71 = sphi 0, %s55
      %s75 = sphi 0, %s75
      %s77 = sphi 0, %s75
      %s78 = sphi 0, %s77
      %s92 = sphi 0, %s78
    $region4: #{loss_fn.1} parent=1 // loop_header_branch
      %18 = sbr.rel (%p16) target = $region8
    $region5: #{loss_fn.1} parent=1 // loop_body
      %s20 = ssub.s32 %s15, 1
      %s21 = ssub.s32 %s15, 2
      %s22 = sadd.s32 %s15, 1
      %s23 = ssub.s32 %s15, %s22
      %p24 = scmp.eq.s32.totalorder %s23, 0
      %s26 = sadd.s32 %s25, 1
      %s27 = scalar_select %p24, %s25, %s26
      %p30 = pneg %p24
      %p31 = scmp.eq.s32.totalorder %s15, 1
      %p32 = por %p30, %p31
      %p33 = scmp.ne.s32.totalorder %s25, %s28
      %p34 = scmp.eq.s32.totalorder %s15, 0
      %p35 = por %p33, %p34
      %p36 = scmp.ne.s32.totalorder %s25, %s28
      %p37 = scmp.eq.s32.totalorder %s20, 1
      %p38 = por %p36, %p37
      %p39 = scmp.ne.s32.totalorder %s28, %s29
      %p40 = scmp.eq.s32.totalorder %s20, 0
      %p41 = por %p39, %p40
      %p42 = scmp.ne.s32.totalorder %s28, %s29
      %p43 = scmp.eq.s32.totalorder %s21, 1
      %p44 = por %p42, %p43
      %p46 = scmp.ne.s32.totalorder %s29, %s45
      %p47 = scmp.eq.s32.totalorder %s21, 0
      %p48 = por %p46, %p47
      %s49 = ssub.s32 %s15, %s22
      %p50 = scmp.eq.s32.totalorder %s49, 0
      %s52 = sadd.s32 %s51, 1
      %s53 = scalar_select %p50, %s51, %s52
      %p56 = pneg %p50
      %p57 = scmp.eq.s32.totalorder %s15, 1
      %p58 = por %p56, %p57
      %p59 = scmp.ne.s32.totalorder %s51, %s54
      %p60 = scmp.eq.s32.totalorder %s15, 0
      %p61 = por %p59, %p60
      %p62 = scmp.ne.s32.totalorder %s51, %s54
      %p63 = scmp.eq.s32.totalorder %s20, 1
      %p64 = por %p62, %p63
      %p65 = scmp.ne.s32.totalorder %s54, %s55
      %p66 = scmp.eq.s32.totalorder %s20, 0
      %p67 = por %p65, %p66
      %p68 = scmp.ne.s32.totalorder %s54, %s55
      %p69 = scmp.eq.s32.totalorder %s21, 1
      %p70 = por %p68, %p69
      %p72 = scmp.ne.s32.totalorder %s55, %s71
      %p73 = scmp.eq.s32.totalorder %s21, 0
      %p74 = por %p72, %p73
      %s76 = sadd.s32 %s75, 1
      %p79 = scmp.eq.s32.totalorder %s15, 1
      %p80 = scmp.ne.s32.totalorder %s75, %s77
      %p81 = scmp.eq.s32.totalorder %s15, 0
      %p82 = por %p80, %p81
      %p83 = scmp.ne.s32.totalorder %s75, %s77
      %p84 = scmp.eq.s32.totalorder %s20, 1
      %p85 = por %p83, %p84
      %p86 = scmp.ne.s32.totalorder %s77, %s78
      %p87 = scmp.eq.s32.totalorder %s20, 0
      %p88 = por %p86, %p87
      %p89 = scmp.ne.s32.totalorder %s77, %s78
      %p90 = scmp.eq.s32.totalorder %s21, 1
      %p91 = por %p89, %p90
      %p93 = scmp.ne.s32.totalorder %s78, %s92
      %p94 = scmp.eq.s32.totalorder %s21, 0
      %p95 = por %p93, %p94
      %p96 = scmp.le.s32.totalorder 1, %s15
      %p97 = scmp.lt.s32.totalorder %s15, 3
      %p98 = pnand %p96, %p97
      %p99 = pneg %p98
      // Predicated region
      $region9: #{loss_fn.1} parent=5 // pred_check
        _
      $region10: #{loss_fn.1} parent=5 // pred_check_branch
        %101 = sbr.rel (%p98) target = $region12
      $region11: #{loss_fn.1} parent=5 // pred_region
        %s102 = ssub.s32 %s15, 1
      $region12: #{loss_fn.1} parent=5 // pred_fallthru
        _
      %p103 = scmp.lt.s32.totalorder %s15, 2
      // Predicated region
      $region13: #{loss_fn.1} parent=5 // pred_check
        %p104 = pneg %p103
      $region14: #{loss_fn.1} parent=5 // pred_check_branch
        %106 = sbr.rel (%p104) target = $region16
      $region15: #{loss_fn.1} parent=5 // pred_region
        // Predicated region
        $region17: #{loss_fn.1} parent=15 // pred_check
          %p107 = pneg %p35
        $region18: #{loss_fn.1} parent=15 // pred_check_branch
          %109 = sbr.rel (%p107) target = $region20
        $region19: #{loss_fn.1} parent=15 // pred_region
          %s110 = sand.u32 %s25, 1
          %s111 = scalar_lea.sflag [#allocation6], %s110
          %s112 = sand.u32 %s25, 1
          %s113 = smul.addr %s112, 8
          %s114 = scalar_lea.vmem [#allocation5], %s113
          %116 = vsyncadd %s111, 0
          %s117 = smul.addr %s15, 8
          %s118 = scalar_lea.hbm %s0, %s117
          %s120 = sshll.u32 %s118, 4
          %s121 = int_to_ptr.hbm [resolvable:$true] %s120
          %s122 = sshll.u32 %s114, 4
          %s123 = int_to_ptr.vmem [resolvable:$true] %s122
          %125 = dma.hbm_to_vmem [thread:$0]  %s121, 128, %s123, %s111
        $region20: #{loss_fn.1} parent=15 // pred_fallthru
          _
        // Predicated region
        $region21: #{loss_fn.1} parent=15 // pred_check
          %p126 = pneg %p61
        $region22: #{loss_fn.1} parent=15 // pred_check_branch
          %128 = sbr.rel (%p126) target = $region24
        $region23: #{loss_fn.1} parent=15 // pred_region
          %s129 = sand.u32 %s51, 1
          %s130 = scalar_lea.sflag [#allocation9], %s129
          %s131 = sand.u32 %s51, 1
          %s132 = smul.addr %s131, 8
          %s133 = scalar_lea.vmem [#allocation8], %s132
          %135 = vsyncadd %s130, 0
          %s136 = smul.addr %s15, 8
          %s137 = scalar_lea.hbm %s1, %s136
          %s139 = sshll.u32 %s137, 4
          %s140 = int_to_ptr.hbm [resolvable:$true] %s139
          %s141 = sshll.u32 %s133, 4
          %s142 = int_to_ptr.vmem [resolvable:$true] %s141
          %144 = dma.hbm_to_vmem [thread:$0]  %s140, 128, %s142, %s130
        $region24: #{loss_fn.1} parent=15 // pred_fallthru
          _
      $region16: #{loss_fn.1} parent=5 // pred_fallthru
        _
      %p145 = scmp.le.s32.totalorder 1, %s15
      %p146 = scmp.lt.s32.totalorder %s15, 3
      %p147 = pnand %p145, %p146
      %p148 = pneg %p147
      // Predicated region
      $region25: #{loss_fn.1} parent=5 // pred_check
        _
      $region26: #{loss_fn.1} parent=5 // pred_check_branch
        %150 = sbr.rel (%p147) target = $region28
      $region27: #{loss_fn.1} parent=5 // pred_region
        %s151 = ssub.s32 %s15, 1
        %s152 = sand.u32 %s28, 1
        %s153 = scalar_lea.sflag [#allocation6], %s152
        %s154 = sand.u32 %s28, 1
        %s155 = smul.addr %s154, 8
        %s156 = scalar_lea.vmem [#allocation5], %s155
        // Predicated region
        $region29: #{loss_fn.1} parent=27 // pred_check
          %p157 = pneg %p41
        $region30: #{loss_fn.1} parent=27 // pred_check_branch
          %159 = sbr.rel (%p157) target = $region32
        $region31: #{loss_fn.1} parent=27 // pred_region
          %161 = dma.done %s153, 128
        $region32: #{loss_fn.1} parent=27 // pred_fallthru
          _
        %s162 = sand.u32 %s54, 1
        %s163 = scalar_lea.sflag [#allocation9], %s162
        %s164 = sand.u32 %s54, 1
        %s165 = smul.addr %s164, 8
        %s166 = scalar_lea.vmem [#allocation8], %s165
        // Predicated region
        $region33: #{loss_fn.1} parent=27 // pred_check
          %p167 = pneg %p67
        $region34: #{loss_fn.1} parent=27 // pred_check_branch
          %169 = sbr.rel (%p167) target = $region36
        $region35: #{loss_fn.1} parent=27 // pred_region
          %171 = dma.done %s163, 128
        $region36: #{loss_fn.1} parent=27 // pred_fallthru
          _
        %s172 = sand.u32 %s28, 1
        %s173 = scalar_lea.sflag [#allocation6], %s172
        %s174 = sand.u32 %s28, 1
        %s175 = smul.addr %s174, 8
        %s176 = scalar_lea.vmem [#allocation5], %s175
        %p177 = pneg %p41
        %p178 = pneg %p38
        %s179 = sand.u32 %s54, 1
        %s180 = scalar_lea.sflag [#allocation9], %s179
        %s181 = sand.u32 %s54, 1
        %s182 = smul.addr %s181, 8
        %s183 = scalar_lea.vmem [#allocation8], %s182
        %p184 = pneg %p67
        %p185 = pneg %p64
        %p186 = pneg %p88
        %p187 = pneg %p85
        %p188 = scmp.eq.s32.totalorder %s20, 0
        // Predicated region
        $region37: #{loss_fn.1} parent=27 // pred_check
          %p189 = pneg %p188
        $region38: #{loss_fn.1} parent=27 // pred_check_branch
          %191 = sbr.rel (%p189) target = $region40
        $region39: #{loss_fn.1} parent=27 // pred_region
          %vm192 = vcmask 0
          %193 = vst.msk [vmem:[#allocation2] sm:$0x1] %vm192, 0.0
          %194 = vst.msk [vmem:[#allocation3] sm:$0x1] %vm192, 0.0
          %195 = vst.msk [vmem:[#allocation4] sm:$0x1] %vm192, 0.0
        $region40: #{loss_fn.1} parent=27 // pred_fallthru
          _
        %v196 = vld [vmem:[%s156] sm:$0xff]
        %v197 = vld [vmem:[%s166] sm:$0xff]
        %198 = vadd.xlane.f32.xlu0 %v196
        %v199 = vpop.xlane.xlu0 %198
        %v200 = vrcp.pop 128.0
        %v201 = vmul.f32 128.0, %v200
        %v202 = vsub.f32 1.0, %v201
        %v203 = vmul.f32 %v200, %v202
        %v204 = vadd.f32 %v200, %v203
        %vm205 = vweird.f32 %v200
        %v206 = vsel %vm205, %v200, %v204
        %v207 = vmul.f32 %v199, %v206
        %v208 = vsub.f32 %v196, %v207
        %209 = vadd.xlane.f32.xlu0 %v197
        %v210 = vpop.xlane.xlu0 %209
        %v211 = vmul.f32 %v210, %v206
        %v212 = vsub.f32 %v197, %v211
        %v213 = vld [vmem:[#allocation2] sm:$0x1]
        %v214 = vmul.f32 %v208, %v212
        %215 = vadd.xlane.f32.xlu0 %v214
        %v216 = vpop.xlane.xlu0 %215
        %v217 = vrot.slane %v216, 4
        %v218 = vadd.f32 %v216, %v217
        %v219 = vrot.slane %v218, 2
        %v220 = vadd.f32 %v218, %v219
        %v221 = vrot.slane %v220, 1
        %v222 = vadd.f32 %v220, %v221
        %s223 = vtos %v222
        %v224 = vstv %s223
        %v225 = vadd.f32 %v213, %v224
        %vm226 = vcmask 0
        %227 = vst.msk [vmem:[#allocation2] sm:$0x1] %vm226, %v225
        %v228 = vld [vmem:[#allocation3] sm:$0x1]
        %v229 = vmul.f32 %v208, %v208
        %230 = vadd.xlane.f32.xlu0 %v229
        %v231 = vpop.xlane.xlu0 %230
        %v232 = vrot.slane %v231, 4
        %v233 = vadd.f32 %v231, %v232
        %v234 = vrot.slane %v233, 2
        %v235 = vadd.f32 %v233, %v234
        %v236 = vrot.slane %v235, 1
        %v237 = vadd.f32 %v235, %v236
        %s238 = vtos %v237
        %v239 = vstv %s238
        %v240 = vadd.f32 %v228, %v239
        %241 = vst.msk [vmem:[#allocation3] sm:$0x1] %vm226, %v240
        %v242 = vld [vmem:[#allocation4] sm:$0x1]
        %v243 = vmul.f32 %v212, %v212
        %244 = vadd.xlane.f32.xlu0 %v243
        %v245 = vpop.xlane.xlu0 %244
        %v246 = vrot.slane %v245, 4
        %v247 = vadd.f32 %v245, %v246
        %v248 = vrot.slane %v247, 2
        %v249 = vadd.f32 %v247, %v248
        %v250 = vrot.slane %v249, 1
        %v251 = vadd.f32 %v249, %v250
        %s252 = vtos %v251
        %v253 = vstv %s252
        %v254 = vadd.f32 %v242, %v253
        %255 = vst.msk [vmem:[#allocation4] sm:$0x1] %vm226, %v254
        %p256 = scmp.eq.s32.totalorder %s20, 1
        // Predicated region
        $region41: #{loss_fn.1} parent=27 // pred_check
          %p257 = pneg %p256
        $region42: #{loss_fn.1} parent=27 // pred_check_branch
          %259 = sbr.rel (%p257) target = $region44
        $region43: #{loss_fn.1} parent=27 // pred_region
          %v260 = vld [vmem:[#allocation2] sm:$0x1]
          %v261 = vld [vmem:[#allocation3] sm:$0x1]
          %v262 = vld [vmem:[#allocation4] sm:$0x1]
          %v263 = vmul.f32 %v261, %v262
          %v264 = vrsqrt.pop %v263
          %v265 = vmul.f32 %v264, %v263
          %v266 = vmul.f32 %v265, %v264
          %v267 = vmul.f32 0.5, %v266
          %v268 = vsub.f32 1.5, %v267
          %v269 = vmul.f32 %v264, %v268
          %vm270 = vweird.f32 %v263
          %vm271 = vweird.f32 %v264
          %vm272 = vmor %vm270, %vm271
          %v273 = vsel %vm272, %v264, %v269
          %v274 = vmul.f32 %v260, %v273
          %v275 = vsub.f32 1.0, %v274
          %276 = vst.msk [vmem:[#allocation10] sm:$0x1] %vm226, %v275
        $region44: #{loss_fn.1} parent=27 // pred_fallthru
          _
        // Predicated region
        $region45: #{loss_fn.1} parent=27 // pred_check
          %p277 = pneg %p85
        $region46: #{loss_fn.1} parent=27 // pred_check_branch
          %279 = sbr.rel (%p277) target = $region48
        $region47: #{loss_fn.1} parent=27 // pred_region
          %281 = vsyncadd [#allocation7], 0
          %s283 = sshll.u32 [#allocation10], 4
          %s284 = int_to_ptr.vmem [resolvable:$true] %s283
          %s285 = sshll.u32 %s2, 4
          %s286 = int_to_ptr.hbm [resolvable:$true] %s285
          %288 = dma.vmem_to_hbm [thread:$0]  %s284, 16, %s286, [#allocation7]
        $region48: #{loss_fn.1} parent=27 // pred_fallthru
          _
        // Predicated region
        $region49: #{loss_fn.1} parent=27 // pred_check
          %p289 = pneg %p85
        $region50: #{loss_fn.1} parent=27 // pred_check_branch
          %291 = sbr.rel (%p289) target = $region52
        $region51: #{loss_fn.1} parent=27 // pred_region
          %293 = dma.done [#allocation7], 16
        $region52: #{loss_fn.1} parent=27 // pred_fallthru
          _
      $region28: #{loss_fn.1} parent=5 // pred_fallthru
        _
      %p294 = scmp.le.s32.totalorder 2, %s15
      // Predicated region
      $region53: #{loss_fn.1} parent=5 // pred_check
        %p295 = pneg %p294
      $region54: #{loss_fn.1} parent=5 // pred_check_branch
        %297 = sbr.rel (%p295) target = $region56
      $region55: #{loss_fn.1} parent=5 // pred_region
        %s298 = ssub.s32 %s15, 2
      $region56: #{loss_fn.1} parent=5 // pred_fallthru
        _
    $region6: #{loss_fn.1} parent=1 // loop_footer
      %s19 = sadd.s32 1, %s15
    $region7: #{loss_fn.1} parent=1 // loop_footer_branch
      %14 = sbr.rel target = $region3
    $region8: #{loss_fn.1} parent=1 // loop_exit
      _
    %299 = vsyncpa [#allocation6], 1
    %s300 = scalar_lea.sflag [#allocation6], 1
    %301 = vsyncpa %s300, 1
    %302 = vsyncpa [#allocation9], 1
    %s303 = scalar_lea.sflag [#allocation9], 1
    %304 = vsyncpa %s303, 1
    %305 = vsyncpa [#allocation7], 1
    %s306 = scalar_lea.sflag [#allocation7], 1
    %307 = vsyncpa %s306, 1

</llo_original>
